<compile_context>
chip_gen: v5e
topology: v5e:2x2
jax: 0.10.0
libtpu: 0.0.40
codegen_flags: <defaults>
</compile_context>

<pallas_src>
import functools

import jax
import jax.numpy as jnp
from jax import lax
from jax.experimental import pallas as pl
from jax.experimental.pallas import tpu as pltpu

NEG_INF = -1e30


def _round_up(x, m):
    return ((x + m - 1) // m) * m


def _choose_tiles(n, block_q, block_kv):
    """Pick (Tq, Tk, N_pad) with Tk | Tq | N_pad and minimal padding."""
    tk = min(_round_up(block_kv, 128), _round_up(n, 128))
    n_pad = _round_up(n, tk)
    n_kv = n_pad // tk
    d = 1
    for cand in range(1, n_kv + 1):
        if n_kv % cand == 0 and cand * tk <= max(block_q, tk):
            d = cand
    return d * tk, tk, n_pad


# ---------------------------------------------------------------------------
# Kernel 1: projection + attention-vector epilogue (tiled over node blocks)
#   h      = x @ W                      (bf16 out, f32 accumulation)
#   f_src  = sum(h * a_src, -1)         (f32, computed before the downcast)
#   f_dst  = a_dst @ h^T                (f32, lane-dense row; padded kv
#                                        columns pre-masked to NEG_INF)
# ---------------------------------------------------------------------------
def gat_proj_kernel(x_ref, w_ref, a_src_ref, a_dst_ref,
                    h_ref, fsrc_ref, fdst_ref, *, n_valid, n_padded, tile):
    h = jnp.dot(x_ref[...], w_ref[...], preferred_element_type=jnp.float32)
    h_ref[...] = h.astype(h_ref.dtype)                      # bf16 for the MXU / HBM
    # f_src: VPU multiply + lane reduction (no 1-lane-wide MXU output).
    fsrc_ref[...] = jnp.sum(h * a_src_ref[...], axis=-1, keepdims=True)
    # f_dst produced directly as a lane-dense (1, tile) row.
    fdst = lax.dot_general(a_dst_ref[...], h, (((1,), (1,)), ((), ())),
                           preferred_element_type=jnp.float32)
    if n_valid < n_padded:
        # One-time mask of padded kv columns, so the attention kernel needs
        # no per-step (Tq, Tk) mask at all.
        col = pl.program_id(0) * tile + lax.broadcasted_iota(
            jnp.int32, fdst.shape, 1)
        fdst = jnp.where(col < n_valid, fdst, NEG_INF)
    fdst_ref[...] = fdst


# ---------------------------------------------------------------------------
# Kernel 2: attention with online softmax (flash-attention pattern).
#   grid = (query blocks [parallel], kv blocks [arbitrary / reduction])
# ---------------------------------------------------------------------------
def gat_attn_kernel(fsrc_ref, fdst_ref, hk_ref, out_ref,
                    m_sc, l_sc, acc_sc, *, alpha, concat):
    ki = pl.program_id(1)

    @pl.when(ki == 0)
    def _init():
        m_sc[...] = jnp.full(m_sc.shape, -jnp.inf, jnp.float32)
        l_sc[...] = jnp.zeros(l_sc.shape, jnp.float32)
        acc_sc[...] = jnp.zeros(acc_sc.shape, jnp.float32)

    # e[i, j] = LeakyReLU(f_src[i] + f_dst[j]); padded kv columns already
    # carry NEG_INF in f_dst, so they underflow to 0 in the softmax.
    e = fsrc_ref[...] + fdst_ref[...]                      # (Tq, Tk) f32
    if 0.0 <= alpha <= 1.0:
        e = jnp.maximum(e, alpha * e)                      # LeakyReLU (mul+max)
    else:
        e = jnp.where(e >= 0, e, alpha * e)

    # Online softmax update.
    m_prev = m_sc[...]
    m_new = jnp.maximum(m_prev, jnp.max(e, axis=-1, keepdims=True))
    corr = jnp.exp(m_prev - m_new)
    p = jnp.exp(e - m_new)                                 # (Tq, Tk) <= 1
    l_sc[...] = corr * l_sc[...] + jnp.sum(p, axis=-1, keepdims=True)
    # Dominant MXU matmul: bf16 operands (hk stored bf16), f32 accumulation.
    acc_sc[...] = corr * acc_sc[...] + jnp.dot(
        p.astype(jnp.bfloat16), hk_ref[...], preferred_element_type=jnp.float32)
    m_sc[...] = m_new

    # TODO(synk): F.dropout on the attention weights is skipped (dropout=0 /
    # eval-mode semantics); stochastic dropout would need pltpu.prng_* + seed.

    @pl.when(ki == pl.num_programs(1) - 1)
    def _finalize():
        inv_l = pl.reciprocal(l_sc[...], approx=True)      # EUP slot
        hp = acc_sc[...] * inv_l
        if concat:
            # ELU (alpha=1): x if x > 0 else exp(x) - 1
            hp = jnp.where(hp > 0, hp, jnp.expm1(hp))
        out_ref[...] = hp.astype(out_ref.dtype)


# ---------------------------------------------------------------------------
# Wrapper
# ---------------------------------------------------------------------------
def graph_attention_layer(x, adj, W, a, *, alpha=0.2, concat=True,
                          block_q=512, block_kv=256):
    """Pallas forward of GraphAttentionLayer.

    `adj` is accepted for signature parity but is unused: the reference
    forward overwrites the adj-masked attention with `e` before softmax.
    """
    del adj
    N, K = x.shape
    F = W.shape[1]
    assert a.shape == (2 * F, 1)

    # Lane-dense feature dim; asymmetric node tiles (Tq >= Tk, Tk | Tq | N_pad).
    F_pad = _round_up(F, 128)
    Tq, Tk, N_pad = _choose_tiles(N, block_q, block_kv)

    x_p = jnp.pad(x.astype(jnp.float32), ((0, N_pad - N), (0, 0)))
    W_p = jnp.pad(W.astype(jnp.float32), ((0, 0), (0, F_pad - F)))
    a_src = jnp.pad(a[:F, 0].astype(jnp.float32), (0, F_pad - F)).reshape(1, F_pad)
    a_dst = jnp.pad(a[F:, 0].astype(jnp.float32), (0, F_pad - F)).reshape(1, F_pad)

    # VMEM budget derived from the actual block sizes (double-buffered inputs
    # / outputs + scratch + e/p temporaries), clamped below v7x's 64 MiB.
    attn_vmem = (2 * Tq * 4 + 2 * Tk * 4            # f_src / f_dst blocks
                 + 2 * Tk * F_pad * 2               # hk blocks (bf16)
                 + 2 * Tq * F_pad * 4               # out blocks
                 + Tq * 8 + Tq * F_pad * 4          # m, l, acc scratch
                 + 4 * Tq * Tk * 4)                 # e/p temporaries headroom
    vmem_limit = int(min(48 * 1024 * 1024, max(2 * attn_vmem, 16 * 1024 * 1024)))

    # ---- projection + f_src / f_dst epilogue, tiled over node blocks -------
    proj_kernel = functools.partial(gat_proj_kernel, n_valid=N,
                                    n_padded=N_pad, tile=Tq)
    h, f_src, f_dst = pl.pallas_call(
        proj_kernel,
        out_shape=(jax.ShapeDtypeStruct((N_pad, F_pad), jnp.bfloat16),
                   jax.ShapeDtypeStruct((N_pad, 1), jnp.float32),
                   jax.ShapeDtypeStruct((1, N_pad), jnp.float32)),
        grid=(N_pad // Tq,),
        in_specs=[pl.BlockSpec((Tq, K), lambda i: (i, 0)),
                  pl.BlockSpec((K, F_pad), lambda i: (0, 0)),
                  pl.BlockSpec((1, F_pad), lambda i: (0, 0)),
                  pl.BlockSpec((1, F_pad), lambda i: (0, 0))],
        out_specs=(pl.BlockSpec((Tq, F_pad), lambda i: (i, 0)),
                   pl.BlockSpec((Tq, 1), lambda i: (i, 0)),
                   pl.BlockSpec((1, Tq), lambda i: (0, i))),
        compiler_params=pltpu.CompilerParams(
            dimension_semantics=("parallel",),
            vmem_limit_bytes=vmem_limit),
    )(x_p, W_p, a_src, a_dst)

    # ---- attention: flash-style online softmax over kv blocks --------------
    attn_kernel = functools.partial(gat_attn_kernel, alpha=float(alpha),
                                    concat=bool(concat))
    n_q = N_pad // Tq
    n_kv = N_pad // Tk
    cost = pl.CostEstimate(
        flops=2 * N_pad * N_pad * F_pad + 8 * N_pad * N_pad,
        transcendentals=N_pad * N_pad + 2 * N_pad * n_kv,
        bytes_accessed=(n_q * (N_pad * F_pad * 2 + N_pad * 4)   # hk + f_dst
                        + N_pad * 4                             # f_src
                        + N_pad * F_pad * 4),                   # output
    )
    out_p = pl.pallas_call(
        attn_kernel,
        out_shape=jax.ShapeDtypeStruct((N_pad, F_pad), x.dtype),
        grid_spec=pltpu.PrefetchScalarGridSpec(
            num_scalar_prefetch=0,
            grid=(n_q, n_kv),
            in_specs=[
                pl.BlockSpec((Tq, 1), lambda qi, ki: (qi, 0)),      # f_src
                pl.BlockSpec((1, Tk), lambda qi, ki: (0, ki)),      # f_dst
                pl.BlockSpec((Tk, F_pad), lambda qi, ki: (ki, 0)),  # h (kv)
            ],
            out_specs=pl.BlockSpec((Tq, F_pad), lambda qi, ki: (qi, 0)),
            scratch_shapes=[pltpu.VMEM((Tq, 1), jnp.float32),       # running max
                            pltpu.VMEM((Tq, 1), jnp.float32),       # running sum
                            pltpu.VMEM((Tq, F_pad), jnp.float32)]), # accumulator
        compiler_params=pltpu.CompilerParams(
            dimension_semantics=("parallel", "arbitrary"),
            vmem_limit_bytes=vmem_limit),
        cost_estimate=cost,
    )(f_src, f_dst, h)

    return out_p[:N, :F]


# ---------------------------------------------------------------------------
# Pure-JAX reference and test harness
# ---------------------------------------------------------------------------
def gat_reference(x, adj, W, a, *, alpha=0.2, concat=True):
    """Pure-JAX reference mirroring the PyTorch forward (dropout=0)."""
    del adj
    F_out = W.shape[1]
    h = x @ W
    f_src = h @ a[:F_out]                  # (N, 1)
    f_dst = h @ a[F_out:]                  # (N, 1)
    e = f_src + f_dst.T                    # (N, N)
    e = jnp.where(e >= 0, e, alpha * e)    # LeakyReLU(alpha)
    att = jax.nn.softmax(e, axis=1)
    h_prime = att @ h
    return jax.nn.elu(h_prime) if concat else h_prime


def xavier_uniform(key, shape, gain):
    # Matches torch.nn.init.xavier_uniform_ for 2-D tensors.
    fan_sum = shape[0] + shape[1]
    bound = gain * (6.0 / fan_sum) ** 0.5
    return jax.random.uniform(key, shape, jnp.float32, -bound, bound)


if __name__ == "__main__":
    def check(N, in_features, out_features, alpha, concat, block_q, block_kv):
        key = jax.random.PRNGKey(0)
        kx, kadj, kw, ka = jax.random.split(key, 4)
        x = jax.random.normal(kx, (N, in_features), jnp.float32)
        adj = (jax.random.uniform(kadj, (N, N)) > 0.5).astype(jnp.float32)
        W = xavier_uniform(kw, (in_features, out_features), gain=1.414)
        a = xavier_uniform(ka, (2 * out_features, 1), gain=1.414)

        out = graph_attention_layer(x, adj, W, a, alpha=alpha, concat=concat,
                                    block_q=block_q, block_kv=block_kv)
        out = jax.block_until_ready(out)
        ref = gat_reference(x, adj, W, a, alpha=alpha, concat=concat)
        assert out.shape == (N, out_features)
        # bf16 h / p MXU operands + approx reciprocal -> relaxed tolerance
        assert jnp.allclose(out, ref, rtol=2e-2, atol=2e-2), (
            f"mismatch vs reference (N={N}): "
            f"max abs err {float(jnp.max(jnp.abs(out - ref)))}")

    # Small shape consistent with the module (single grid point after padding).
    check(N=8, in_features=16, out_features=32, alpha=0.2, concat=True,
          block_q=512, block_kv=256)
    # Ragged, multi-kv-block case with default asymmetric tiles.
    check(N=300, in_features=24, out_features=48, alpha=0.2, concat=True,
          block_q=512, block_kv=256)
    # Multi-block in both grid axes + kv-padding mask + concat=False path.
    check(N=300, in_features=24, out_features=48, alpha=0.2, concat=False,
          block_q=128, block_kv=128)

    print("KERNEL_OK")
</pallas_src>

<mosaic_0001>
module attributes {stable_mosaic.version = 11 : i64} {
  func.func @gat_proj_kernel(%arg0: i32, %arg1: memref<128x16xf32, #tpu.memory_space<vmem>>, %arg2: memref<16x128xf32, #tpu.memory_space<vmem>>, %arg3: memref<1x128xf32, #tpu.memory_space<vmem>>, %arg4: memref<1x128xf32, #tpu.memory_space<vmem>>, %arg5: memref<128x128xbf16, #tpu.memory_space<vmem>>, %arg6: memref<128x1xf32, #tpu.memory_space<vmem>>, %arg7: memref<1x128xf32, #tpu.memory_space<vmem>>) attributes {dimension_semantics = [#tpu.dimension_semantics<parallel>], iteration_bounds = array<i64: 1>, scalar_prefetch = 0 : i64, scratch_operands = 0 : i64, tpu.core_type = #tpu.core_type<tc>, window_params = [{transform_indices = @transform_0, window_bounds = array<i64: 128, 16>}, {pipeline_mode = #tpu.pipeline_mode<synchronous>, transform_indices = @transform_1, window_bounds = array<i64: 16, 128>}, {pipeline_mode = #tpu.pipeline_mode<synchronous>, transform_indices = @transform_2, window_bounds = array<i64: 1, 128>}, {pipeline_mode = #tpu.pipeline_mode<synchronous>, transform_indices = @transform_3, window_bounds = array<i64: 1, 128>}, {transform_indices = @transform_4, window_bounds = array<i64: 128, 128>}, {transform_indices = @transform_5, window_bounds = array<i64: 128, 1>}, {transform_indices = @transform_6, window_bounds = array<i64: 1, 128>}]} {
    %c0 = arith.constant 0 : index
    %c0_0 = arith.constant 0 : index
    %0 = vector.load %arg1[%c0, %c0_0] : memref<128x16xf32, #tpu.memory_space<vmem>>, vector<128x16xf32>
    %c0_1 = arith.constant 0 : index
    %c0_2 = arith.constant 0 : index
    %1 = vector.load %arg2[%c0_1, %c0_2] : memref<16x128xf32, #tpu.memory_space<vmem>>, vector<16x128xf32>
    %cst = arith.constant dense<0.000000e+00> : vector<128x128xf32>
    %2 = tpu.matmul %0, %1, %cst {dimension_numbers = #tpu.dot_dimension_numbers<[1], [0], [0], [1], [0, 0, 1, 1], [], []>} : vector<128x16xf32>, vector<16x128xf32>, vector<128x128xf32> -> vector<128x128xf32>
    %3 = arith.truncf %2 : vector<128x128xf32> to vector<128x128xbf16>
    %c0_3 = arith.constant 0 : index
    %c0_4 = arith.constant 0 : index
    %4 = vector.load %arg5[%c0_3, %c0_4] : memref<128x128xbf16, #tpu.memory_space<vmem>>, vector<128x128xbf16>
    tpu.vector_store %arg5[%c0_3, %c0_4], %3 {strides = array<i32>} : memref<128x128xbf16, #tpu.memory_space<vmem>>, vector<128x128xbf16>,
    %c0_5 = arith.constant 0 : index
    %c0_6 = arith.constant 0 : index
    %5 = vector.load %arg3[%c0_5, %c0_6] : memref<1x128xf32, #tpu.memory_space<vmem>>, vector<1x128xf32>
    %6 = vector.broadcast %5 : vector<1x128xf32> to vector<128x128xf32>
    %7 = arith.mulf %2, %6 : vector<128x128xf32>
    %cst_7 = arith.constant dense<0.000000e+00> : vector<128xf32>
    %8 = vector.multi_reduction <add>, %7, %cst_7 [1] : vector<128x128xf32> to vector<128xf32>
    %9 = vector.shape_cast %8 : vector<128xf32> to vector<128x1xf32>
    %c0_8 = arith.constant 0 : index
    %c0_9 = arith.constant 0 : index
    %10 = vector.load %arg6[%c0_8, %c0_9] : memref<128x1xf32, #tpu.memory_space<vmem>>, vector<128x1xf32>
    tpu.vector_store %arg6[%c0_8, %c0_9], %9 {strides = array<i32>} : memref<128x1xf32, #tpu.memory_space<vmem>>, vector<128x1xf32>,
    %c0_10 = arith.constant 0 : index
    %c0_11 = arith.constant 0 : index
    %11 = vector.load %arg4[%c0_10, %c0_11] : memref<1x128xf32, #tpu.memory_space<vmem>>, vector<1x128xf32>
    %cst_12 = arith.constant dense<0.000000e+00> : vector<1x128xf32>
    %12 = tpu.matmul %11, %2, %cst_12 {dimension_numbers = #tpu.dot_dimension_numbers<[1], [1], [0], [0], [0, 0, 1, 0], [], []>} : vector<1x128xf32>, vector<128x128xf32>, vector<1x128xf32> -> vector<1x128xf32>
    %c128_i32 = arith.constant 128 : i32
    %13 = arith.muli %arg0, %c128_i32 : i32
    %14 = tpu.iota {dimensions = array<i32: 1>} : vector<1x128xi32>
    %15 = vector.broadcast %13 : i32 to vector<1x128xi32>
    %16 = arith.addi %15, %14 : vector<1x128xi32>
    %c8_i32 = arith.constant 8 : i32
    %17 = vector.broadcast %c8_i32 : i32 to vector<1x128xi32>
    %18 = arith.cmpi slt, %16, %17 : vector<1x128xi32>
    %cst_13 = arith.constant -1.000000e+30 : f32
    %19 = vector.broadcast %cst_13 : f32 to vector<1x128xf32>
    %20 = arith.select %18, %12, %19 : vector<1x128xi1>, vector<1x128xf32>
    %c0_14 = arith.constant 0 : index
    %c0_15 = arith.constant 0 : index
    %21 = vector.load %arg7[%c0_14, %c0_15] : memref<1x128xf32, #tpu.memory_space<vmem>>, vector<1x128xf32>
    tpu.vector_store %arg7[%c0_14, %c0_15], %20 {strides = array<i32>} : memref<1x128xf32, #tpu.memory_space<vmem>>, vector<1x128xf32>,
    return
  }
  func.func @transform_0(%arg0: i32) -> (i32, i32) {
    %c0_i32 = arith.constant 0 : i32
    %c0_i32_0 = arith.constant 0 : i32
    return %arg0, %c0_i32 : i32, i32
  }
  func.func @transform_1(%arg0: i32) -> (i32, i32) {
    %c0_i32 = arith.constant 0 : i32
    %c0_i32_0 = arith.constant 0 : i32
    %c0_i32_1 = arith.constant 0 : i32
    return %c0_i32, %c0_i32_0 : i32, i32
  }
  func.func @transform_2(%arg0: i32) -> (i32, i32) {
    %c0_i32 = arith.constant 0 : i32
    %c0_i32_0 = arith.constant 0 : i32
    %c0_i32_1 = arith.constant 0 : i32
    return %c0_i32, %c0_i32_0 : i32, i32
  }
  func.func @transform_3(%arg0: i32) -> (i32, i32) {
    %c0_i32 = arith.constant 0 : i32
    %c0_i32_0 = arith.constant 0 : i32
    %c0_i32_1 = arith.constant 0 : i32
    return %c0_i32, %c0_i32_0 : i32, i32
  }
  func.func @transform_4(%arg0: i32) -> (i32, i32) {
    %c0_i32 = arith.constant 0 : i32
    %c0_i32_0 = arith.constant 0 : i32
    return %arg0, %c0_i32 : i32, i32
  }
  func.func @transform_5(%arg0: i32) -> (i32, i32) {
    %c0_i32 = arith.constant 0 : i32
    %c0_i32_0 = arith.constant 0 : i32
    return %arg0, %c0_i32 : i32, i32
  }
  func.func @transform_6(%arg0: i32) -> (i32, i32) {
    %c0_i32 = arith.constant 0 : i32
    %c0_i32_0 = arith.constant 0 : i32
    return %c0_i32, %arg0 : i32, i32
  }
}

</mosaic_0001>

<llo_original>
// kernel: tpu_custom_call.1
$region0: #{tpu_custom_call.1}
  #allocation0 [shape = 'u32[]', space=smem, size = 0x4, offset = 0x4, fixed_abs, tag = 'smem constant byte address 0x4 - core index']
  #allocation1 [shape = 'u32[72,128]{1,0:T(1,128)}', space=vmem, size = 0x9000, scoped, tag = 'internal scratch']
  %s0 = inlined_call_operand.vmem [shape: f32[128,16], index: 0, kind: input, shape index: {}]
  %s1 = inlined_call_operand.vmem [shape: f32[16,128], index: 1, kind: input, shape index: {}]
  %s2 = inlined_call_operand.vmem [shape: f32[1,128], index: 2, kind: input, shape index: {}]
  %s3 = inlined_call_operand.vmem [shape: f32[1,128], index: 3, kind: input, shape index: {}]
  %s4 = inlined_call_operand.hbm [shape: bf16[128,128], index: 4, kind: output, shape index: {0}]
  %s5 = inlined_call_operand.vmem [shape: f32[128,1], index: 5, kind: output, shape index: {1}]
  %s6 = inlined_call_operand.hbm [shape: f32[1,128], index: 6, kind: output, shape index: {2}]
  %7 = xla_tuple %s4, %s5, %s6
  %s8 = sld [smem:[#allocation0]]
  $region42: #{tpu_custom_call.1} parent=0
    _
  %s10 = ssub.s32 1, %s8
  %s11 = scalar_select 0, %s10, %s8
  $region1: #{tpu_custom_call.1} parent=0
    #allocation2 [shape = 'u8[32768]{0}', space=vmem, size = 0x8000, scoped, tag = 'output window, operand 0, single buffered']
    #allocation3 [shape = 's32[1]{0}', space=sflag, size = 0x4, scoped, tag = 'scoped memory for tpu_custom_call.1']
    #allocation4 [shape = 'u8[512]{0}', space=vmem, size = 0x400, scoped, tag = 'output window, operand 2, single buffered']
    #allocation5 [shape = 's32[1]{0}', space=sflag, size = 0x4, scoped, tag = 'scoped memory for tpu_custom_call.1']
    %12 = vsyncpa [#allocation3], 0
    %13 = vsyncpa [#allocation5], 0
    // Predicated region
    $region2: #{tpu_custom_call.1} parent=1 // pred_check
      _
    $region3: #{tpu_custom_call.1} parent=1 // pred_check_branch
      %15 = sbr.rel (0) target = $region5
    $region4: #{tpu_custom_call.1} parent=1 // pred_region
      _
    $region5: #{tpu_custom_call.1} parent=1 // pred_fallthru
      _
    // Predicated region
    $region6: #{tpu_custom_call.1} parent=1 // pred_check
      _
    $region7: #{tpu_custom_call.1} parent=1 // pred_check_branch
      %17 = sbr.rel (0) target = $region9
    $region8: #{tpu_custom_call.1} parent=1 // pred_region
      _
    $region9: #{tpu_custom_call.1} parent=1 // pred_fallthru
      _
    // Predicated region
    $region10: #{tpu_custom_call.1} parent=1 // pred_check
      _
    $region11: #{tpu_custom_call.1} parent=1 // pred_check_branch
      %19 = sbr.rel (0) target = $region13
    $region12: #{tpu_custom_call.1} parent=1 // pred_region
      _
    $region13: #{tpu_custom_call.1} parent=1 // pred_fallthru
      _
    // Predicated region
    $region14: #{tpu_custom_call.1} parent=1 // pred_check
      _
    $region15: #{tpu_custom_call.1} parent=1 // pred_check_branch
      %21 = sbr.rel (0) target = $region17
    $region16: #{tpu_custom_call.1} parent=1 // pred_region
      _
    $region17: #{tpu_custom_call.1} parent=1 // pred_fallthru
      _
    %v22 = vld [vmem:[%s0] sm:$0xff]
    %v23 = vld [vmem:[%s0 + $0x8] sm:$0xff]
    %v24 = vld [vmem:[%s0 + $0x10] sm:$0xff]
    %v25 = vld [vmem:[%s0 + $0x18] sm:$0xff]
    %v26 = vld [vmem:[%s0 + $0x20] sm:$0xff]
    %v27 = vld [vmem:[%s0 + $0x28] sm:$0xff]
    %v28 = vld [vmem:[%s0 + $0x30] sm:$0xff]
    %v29 = vld [vmem:[%s0 + $0x38] sm:$0xff]
    %v30 = vld [vmem:[%s0 + $0x40] sm:$0xff]
    %v31 = vld [vmem:[%s0 + $0x48] sm:$0xff]
    %v32 = vld [vmem:[%s0 + $0x50] sm:$0xff]
    %v33 = vld [vmem:[%s0 + $0x58] sm:$0xff]
    %v34 = vld [vmem:[%s0 + $0x60] sm:$0xff]
    %v35 = vld [vmem:[%s0 + $0x68] sm:$0xff]
    %v36 = vld [vmem:[%s0 + $0x70] sm:$0xff]
    %v37 = vld [vmem:[%s0 + $0x78] sm:$0xff]
    %v38 = vld [vmem:[%s1] sm:$0xff]
    %v39 = vld [vmem:[%s1 + $0x8] sm:$0xff]
    %vm40 = vcmask 130048
    %v42 = vsel %vm40, %v22, 0
    %v45 = vsel %vm40, %v23, 0
    %v48 = vsel %vm40, %v24, 0
    %v51 = vsel %vm40, %v25, 0
    %v54 = vsel %vm40, %v26, 0
    %v57 = vsel %vm40, %v27, 0
    %v60 = vsel %vm40, %v28, 0
    %v63 = vsel %vm40, %v29, 0
    %v66 = vsel %vm40, %v30, 0
    %v69 = vsel %vm40, %v31, 0
    %v72 = vsel %vm40, %v32, 0
    %v75 = vsel %vm40, %v33, 0
    %v78 = vsel %vm40, %v34, 0
    %v81 = vsel %vm40, %v35, 0
    %v84 = vsel %vm40, %v36, 0
    %v87 = vsel %vm40, %v37, 0
    %89 = vmatpush.msra.mxu0 0.0
    %90 = vmatpush.msra.mxu0 0.0
    %91 = vmatpush.msra.mxu0 0.0
    %92 = vmatpush.msra.mxu0 0.0
    %93 = vmatpush.msra.mxu0 0.0
    %94 = vmatpush.msra.mxu0 0.0
    %95 = vmatpush.msra.mxu0 0.0
    %96 = vmatpush.msra.mxu0 0.0
    %97 = vmatpush.msra.mxu0 0.0
    %98 = vmatpush.msra.mxu0 0.0
    %99 = vmatpush.msra.mxu0 0.0
    %100 = vmatpush.msra.mxu0 0.0
    %101 = vmatpush.msra.mxu0 0.0
    %102 = vmatpush.msra.mxu0 0.0
    %103 = vmatpush.msra.mxu0 %v39
    %104 = vmatpush.msra.mxu0 %v38
    %105 = vmatmul.f32.gmra.mxu0 %v42
    %v106 = vpop.f32.mrf.mxu0
    %v107 = vadd.f32 0.0, %v106
    %108 = vmatmul.f32.gmra.mxu0 %v45
    %v109 = vpop.f32.mrf.mxu0
    %v110 = vadd.f32 0.0, %v109
    %111 = vmatmul.f32.gmra.mxu0 %v48
    %v112 = vpop.f32.mrf.mxu0
    %v113 = vadd.f32 0.0, %v112
    %114 = vmatmul.f32.gmra.mxu0 %v51
    %v115 = vpop.f32.mrf.mxu0
    %v116 = vadd.f32 0.0, %v115
    %117 = vmatmul.f32.gmra.mxu0 %v54
    %v118 = vpop.f32.mrf.mxu0
    %v119 = vadd.f32 0.0, %v118
    %120 = vmatmul.f32.gmra.mxu0 %v57
    %v121 = vpop.f32.mrf.mxu0
    %v122 = vadd.f32 0.0, %v121
    %123 = vmatmul.f32.gmra.mxu0 %v60
    %v124 = vpop.f32.mrf.mxu0
    %v125 = vadd.f32 0.0, %v124
    %126 = vmatmul.f32.gmra.mxu0 %v63
    %v127 = vpop.f32.mrf.mxu0
    %v128 = vadd.f32 0.0, %v127
    %129 = vmatmul.f32.gmra.mxu0 %v66
    %v130 = vpop.f32.mrf.mxu0
    %v131 = vadd.f32 0.0, %v130
    %132 = vmatmul.f32.gmra.mxu0 %v69
    %v133 = vpop.f32.mrf.mxu0
    %v134 = vadd.f32 0.0, %v133
    %135 = vmatmul.f32.gmra.mxu0 %v72
    %v136 = vpop.f32.mrf.mxu0
    %v137 = vadd.f32 0.0, %v136
    %138 = vmatmul.f32.gmra.mxu0 %v75
    %v139 = vpop.f32.mrf.mxu0
    %v140 = vadd.f32 0.0, %v139
    %141 = vmatmul.f32.gmra.mxu0 %v78
    %v142 = vpop.f32.mrf.mxu0
    %v143 = vadd.f32 0.0, %v142
    %144 = vmatmul.f32.gmra.mxu0 %v81
    %v145 = vpop.f32.mrf.mxu0
    %v146 = vadd.f32 0.0, %v145
    %147 = vmatmul.f32.gmra.mxu0 %v84
    %v148 = vpop.f32.mrf.mxu0
    %v149 = vadd.f32 0.0, %v148
    %150 = vmatmul.f32.gmra.mxu0 %v87
    %v151 = vpop.f32.mrf.mxu0
    %v152 = vadd.f32 0.0, %v151
    %153 = vdwg.mxu0
    %v154 = vpack.c.bf16 %v107, %v107
    %v155 = vpack.c.bf16 %v110, %v110
    %v156 = vpack.c.bf16 %v113, %v113
    %v157 = vpack.c.bf16 %v116, %v116
    %v158 = vpack.c.bf16 %v119, %v119
    %v159 = vpack.c.bf16 %v122, %v122
    %v160 = vpack.c.bf16 %v125, %v125
    %v161 = vpack.c.bf16 %v128, %v128
    %v162 = vpack.c.bf16 %v131, %v131
    %v163 = vpack.c.bf16 %v134, %v134
    %v164 = vpack.c.bf16 %v137, %v137
    %v165 = vpack.c.bf16 %v140, %v140
    %v166 = vpack.c.bf16 %v143, %v143
    %v167 = vpack.c.bf16 %v146, %v146
    %v168 = vpack.c.bf16 %v149, %v149
    %v169 = vpack.c.bf16 %v152, %v152
    %170 = vst [vmem:[#allocation2] sm:$0xf] %v154
    %171 = vst [vmem:[#allocation2 + $0x4] sm:$0xf] %v155
    %172 = vst [vmem:[#allocation2 + $0x8] sm:$0xf] %v156
    %173 = vst [vmem:[#allocation2 + $0xc] sm:$0xf] %v157
    %174 = vst [vmem:[#allocation2 + $0x10] sm:$0xf] %v158
    %175 = vst [vmem:[#allocation2 + $0x14] sm:$0xf] %v159
    %176 = vst [vmem:[#allocation2 + $0x18] sm:$0xf] %v160
    %177 = vst [vmem:[#allocation2 + $0x1c] sm:$0xf] %v161
    %178 = vst [vmem:[#allocation2 + $0x20] sm:$0xf] %v162
    %179 = vst [vmem:[#allocation2 + $0x24] sm:$0xf] %v163
    %180 = vst [vmem:[#allocation2 + $0x28] sm:$0xf] %v164
    %181 = vst [vmem:[#allocation2 + $0x2c] sm:$0xf] %v165
    %182 = vst [vmem:[#allocation2 + $0x30] sm:$0xf] %v166
    %183 = vst [vmem:[#allocation2 + $0x34] sm:$0xf] %v167
    %184 = vst [vmem:[#allocation2 + $0x38] sm:$0xf] %v168
    %185 = vst [vmem:[#allocation2 + $0x3c] sm:$0xf] %v169
    %v186 = vld [vmem:[%s2] sm:$0x1]
    %v188 = vperm.slane %v186, 0
    %v190 = vmul.f32 %v107, %v188
    %v191 = vmul.f32 %v110, %v188
    %v192 = vmul.f32 %v113, %v188
    %v193 = vmul.f32 %v116, %v188
    %v194 = vmul.f32 %v119, %v188
    %v195 = vmul.f32 %v122, %v188
    %v196 = vmul.f32 %v125, %v188
    %v197 = vmul.f32 %v128, %v188
    %v198 = vmul.f32 %v131, %v188
    %v199 = vmul.f32 %v134, %v188
    %v200 = vmul.f32 %v137, %v188
    %v201 = vmul.f32 %v140, %v188
    %v202 = vmul.f32 %v143, %v188
    %v203 = vmul.f32 %v146, %v188
    %v204 = vmul.f32 %v149, %v188
    %v205 = vmul.f32 %v152, %v188
    %206 = vadd.xlane.f32.xlu0 %v190
    %v207 = vpop.xlane.xlu0 %206
    %208 = vadd.xlane.f32.xlu0 %v191
    %v209 = vpop.xlane.xlu0 %208
    %210 = vadd.xlane.f32.xlu0 %v192
    %v211 = vpop.xlane.xlu0 %210
    %212 = vadd.xlane.f32.xlu0 %v193
    %v213 = vpop.xlane.xlu0 %212
    %214 = vadd.xlane.f32.xlu0 %v194
    %v215 = vpop.xlane.xlu0 %214
    %216 = vadd.xlane.f32.xlu0 %v195
    %v217 = vpop.xlane.xlu0 %216
    %218 = vadd.xlane.f32.xlu0 %v196
    %v219 = vpop.xlane.xlu0 %218
    %220 = vadd.xlane.f32.xlu0 %v197
    %v221 = vpop.xlane.xlu0 %220
    %222 = vadd.xlane.f32.xlu0 %v198
    %v223 = vpop.xlane.xlu0 %222
    %224 = vadd.xlane.f32.xlu0 %v199
    %v225 = vpop.xlane.xlu0 %224
    %226 = vadd.xlane.f32.xlu0 %v200
    %v227 = vpop.xlane.xlu0 %226
    %228 = vadd.xlane.f32.xlu0 %v201
    %v229 = vpop.xlane.xlu0 %228
    %230 = vadd.xlane.f32.xlu0 %v202
    %v231 = vpop.xlane.xlu0 %230
    %232 = vadd.xlane.f32.xlu0 %v203
    %v233 = vpop.xlane.xlu0 %232
    %234 = vadd.xlane.f32.xlu0 %v204
    %v235 = vpop.xlane.xlu0 %234
    %236 = vadd.xlane.f32.xlu0 %v205
    %v237 = vpop.xlane.xlu0 %236
    %vm238 = vcmask 7168
    %239 = vst.msk [vmem:[%s5] sm:$0xff] %vm238, %v207
    %240 = vst.msk [vmem:[%s5 + $0x8] sm:$0xff] %vm238, %v209
    %241 = vst.msk [vmem:[%s5 + $0x10] sm:$0xff] %vm238, %v211
    %242 = vst.msk [vmem:[%s5 + $0x18] sm:$0xff] %vm238, %v213
    %243 = vst.msk [vmem:[%s5 + $0x20] sm:$0xff] %vm238, %v215
    %244 = vst.msk [vmem:[%s5 + $0x28] sm:$0xff] %vm238, %v217
    %245 = vst.msk [vmem:[%s5 + $0x30] sm:$0xff] %vm238, %v219
    %246 = vst.msk [vmem:[%s5 + $0x38] sm:$0xff] %vm238, %v221
    %247 = vst.msk [vmem:[%s5 + $0x40] sm:$0xff] %vm238, %v223
    %248 = vst.msk [vmem:[%s5 + $0x48] sm:$0xff] %vm238, %v225
    %249 = vst.msk [vmem:[%s5 + $0x50] sm:$0xff] %vm238, %v227
    %250 = vst.msk [vmem:[%s5 + $0x58] sm:$0xff] %vm238, %v229
    %251 = vst.msk [vmem:[%s5 + $0x60] sm:$0xff] %vm238, %v231
    %252 = vst.msk [vmem:[%s5 + $0x68] sm:$0xff] %vm238, %v233
    %253 = vst.msk [vmem:[%s5 + $0x70] sm:$0xff] %vm238, %v235
    %254 = vst.msk [vmem:[%s5 + $0x78] sm:$0xff] %vm238, %v237
    %v255 = vld [vmem:[%s3] sm:$0x1]
    %256 = vmatpush.xpose.msra.mxu0 %v152
    %257 = vmatpush.xpose.msra.mxu0 %v149
    %258 = vmatpush.xpose.msra.mxu0 %v146
    %259 = vmatpush.xpose.msra.mxu0 %v143
    %260 = vmatpush.xpose.msra.mxu0 %v140
    %261 = vmatpush.xpose.msra.mxu0 %v137
    %262 = vmatpush.xpose.msra.mxu0 %v134
    %263 = vmatpush.xpose.msra.mxu0 %v131
    %264 = vmatpush.xpose.msra.mxu0 %v128
    %265 = vmatpush.xpose.msra.mxu0 %v125
    %266 = vmatpush.xpose.msra.mxu0 %v122
    %267 = vmatpush.xpose.msra.mxu0 %v119
    %268 = vmatpush.xpose.msra.mxu0 %v116
    %269 = vmatpush.xpose.msra.mxu0 %v113
    %270 = vmatpush.xpose.msra.mxu0 %v110
    %271 = vmatpush.xpose.msra.mxu0 %v107
    %272 = vmatmul.f32.gmra.mxu0 %v255
    %v273 = vpop.f32.mrf.mxu0
    %v274 = vadd.f32 0.0, %v273
    %275 = vdwg.mxu0
    %s276 = smul.u32 0, 128
    %v277 = vlaneseq
    %v278 = vand.u32 %v277, 127
    %v279 = vstv %s276
    %v280 = vadd.s32 %v279, %v278
    %vm281 = vcmp.lt.s32.totalorder %v280, 8
    %v282 = vsel %vm281, %v274, -1e+30
    %283 = vst [vmem:[#allocation4] sm:$0x1] %v282
    // Predicated region
    $region18: #{tpu_custom_call.1} parent=1 // pred_check
      _
    $region19: #{tpu_custom_call.1} parent=1 // pred_check_branch
      %285 = sbr.rel (0) target = $region21
    $region20: #{tpu_custom_call.1} parent=1 // pred_region
      %287 = vsyncadd [#allocation3], 0
      %s288 = sshll.u32 [#allocation2], 4
      %s289 = int_to_ptr.vmem [resolvable:$true] %s288
      %s290 = sshll.u32 %s4, 4
      %s291 = int_to_ptr.hbm [resolvable:$true] %s290
      %296 = dma.vmem_to_hbm [thread:$0]  %s289, 1024, %s291, [#allocation3], 64, 64, 4
    $region21: #{tpu_custom_call.1} parent=1 // pred_fallthru
      _
    // Predicated region
    $region22: #{tpu_custom_call.1} parent=1 // pred_check
      _
    $region23: #{tpu_custom_call.1} parent=1 // pred_check_branch
      %298 = sbr.rel (0) target = $region25
    $region24: #{tpu_custom_call.1} parent=1 // pred_region
      _
    $region25: #{tpu_custom_call.1} parent=1 // pred_fallthru
      _
    // Predicated region
    $region26: #{tpu_custom_call.1} parent=1 // pred_check
      _
    $region27: #{tpu_custom_call.1} parent=1 // pred_check_branch
      %300 = sbr.rel (0) target = $region29
    $region28: #{tpu_custom_call.1} parent=1 // pred_region
      %302 = vsyncadd [#allocation5], 0
      %s304 = sshll.u32 [#allocation4], 4
      %s305 = int_to_ptr.vmem [resolvable:$true] %s304
      %s306 = sshll.u32 %s6, 4
      %s307 = int_to_ptr.hbm [resolvable:$true] %s306
      %309 = dma.vmem_to_hbm [thread:$0]  %s305, 16, %s307, [#allocation5]
    $region29: #{tpu_custom_call.1} parent=1 // pred_fallthru
      _
    // Predicated region
    $region30: #{tpu_custom_call.1} parent=1 // pred_check
      _
    $region31: #{tpu_custom_call.1} parent=1 // pred_check_branch
      %311 = sbr.rel (0) target = $region33
    $region32: #{tpu_custom_call.1} parent=1 // pred_region
      %313 = dma.done [#allocation3], 1024
    $region33: #{tpu_custom_call.1} parent=1 // pred_fallthru
      _
    // Predicated region
    $region34: #{tpu_custom_call.1} parent=1 // pred_check
      _
    $region35: #{tpu_custom_call.1} parent=1 // pred_check_branch
      %315 = sbr.rel (0) target = $region37
    $region36: #{tpu_custom_call.1} parent=1 // pred_region
      _
    $region37: #{tpu_custom_call.1} parent=1 // pred_fallthru
      _
    // Predicated region
    $region38: #{tpu_custom_call.1} parent=1 // pred_check
      _
    $region39: #{tpu_custom_call.1} parent=1 // pred_check_branch
      %317 = sbr.rel (0) target = $region41
    $region40: #{tpu_custom_call.1} parent=1 // pred_region
      %319 = dma.done [#allocation5], 16
    $region41: #{tpu_custom_call.1} parent=1 // pred_fallthru
      _
    %320 = vsyncpa [#allocation3], 1
    %321 = vsyncpa [#allocation5], 1

</llo_original>
